<compile_context>
chip_gen: v7x
topology: tpu7x:2x2x1
jax: 0.10.0
libtpu: 0.0.40
codegen_flags: <defaults>
</compile_context>

<pallas_src>
import functools

import jax
import jax.numpy as jnp
from jax.experimental import pallas as pl
from jax.experimental.pallas import tpu as pltpu


def _round_up(x, m):
    return ((x + m - 1) // m) * m


def _upsample_tconv_kernel(xa_ref, xh_ref, w_ref, b_ref, o_ref, *, n_taps):
    """One (batch, time-tile) grid step of the phase-major transposed conv.

    xa_ref: (1, M, C)    main low-rate input tile (global rows t*M .. t*M+M)
    xh_ref: (1, H, C)    halo rows (next H low-rate rows, zero-padded at end)
    w_ref : (J, C, Np)   per-tap phase-major weights (grid-invariant)
    b_ref : (1, Np)      phase-major bias (grid-invariant)
    o_ref : (1, M, Np)   phase-major output tile: column p*C_out + co, row m
    """
    m_rows = xa_ref.shape[1]
    xa = xa_ref[0]                                                    # (M, C)

    # Tap 0 needs no shift: one MXU matmul straight into the f32 accumulator.
    acc = jnp.dot(xa, w_ref[0], preferred_element_type=jnp.float32)  # (M, Np)

    if n_taps > 1:
        # Sublane-aligned concat (M and H are both multiples of 8).  The J-1
        # slices below are small static sublane shifts feeding accumulating
        # matmuls -- no lane concat, no (M, J*C) im2col temp.
        x_cat = jnp.concatenate([xa, xh_ref[0]], axis=0)             # (M+H, C)
        for i in range(1, n_taps):
            acc = acc + jnp.dot(x_cat[i:i + m_rows, :], w_ref[i],
                                preferred_element_type=jnp.float32)

    acc = acc + b_ref[...].astype(jnp.float32)
    o_ref[...] = acc[None].astype(o_ref.dtype)


def upsampling_forward(lc, weight, bias, *, stride, max_time_block=None,
                       out_dtype=None, channels_last=False,
                       vmem_budget_bytes=26 * 1024 * 1024):
    """ConvTranspose1d(n_chan, n_chan, K, stride, padding=K-stride) forward.

    lc:     (B, C_in, S_in)   PyTorch NCL layout
    weight: (C_in, C_out, K)  torch ConvTranspose1d weight layout
    bias:   (C_out,) or None
    returns (B, C_out, T) with T = S_in*stride + stride - K
            (or (B, T, C_out) when channels_last=True, skipping the final
             full-output transpose pass).
    """
    B, C_in, S_in = lc.shape
    wc_in, C_out, K = weight.shape
    assert wc_in == C_in
    S = int(stride)
    pad = K - S
    assert pad >= 0, "filter_sz must be >= stride (torch requires padding >= 0)"
    T = S_in * S + S - K
    J = (K - 1) // S + 1                       # taps per output phase

    dtype = lc.dtype
    out_dtype = dtype if out_dtype is None else jnp.dtype(out_dtype)
    ebytes = jnp.dtype(dtype).itemsize
    obytes = jnp.dtype(out_dtype).itemsize

    N = S * C_out
    N_pad = _round_up(N, 128)                  # lane-dense output stores

    # Halo rows: the next J-1 low-rate samples, rounded to a sublane multiple.
    H = _round_up(max(J - 1, 1), 8)
    assert J - 1 <= H

    # ---- time-tile size M from a VMEM budget --------------------------------
    def vmem_bytes(m):
        io = 2 * (m * C_in + H * C_in + m * N_pad + N_pad) * ebytes  # dbl-buffered
        wgt = 2 * J * C_in * N_pad * ebytes                          # (dbl-buffered)
        tmp = (m + H) * C_in * ebytes + m * C_in * ebytes + m * N_pad * 4
        return io + wgt + tmp

    limit = max_time_block if max_time_block is not None else 1 << 30
    limit = max(min(limit, _round_up(S_in, H)), H)
    gran = 256 if (limit >= 256 and 256 % H == 0) else H   # MXU-friendly when possible
    M = gran
    while M + gran <= limit and vmem_bytes(M + gran) <= vmem_budget_bytes:
        M += gran
    assert M % H == 0

    nT = -(-S_in // M)                         # ceil(S_in / M)
    S_pad = nT * M + H                         # main tiles + one halo block
    m_per_h = M // H

    vmem_est = vmem_bytes(M)
    vmem_limit = int(min(max(48 * 1024 * 1024, vmem_est + (8 << 20)),
                         64 * 1024 * 1024))

    # ---- cheap layout glue (low-rate side only) ------------------------------
    x_nlc = jnp.transpose(lc, (0, 2, 1))                             # (B, S_in, C)
    x_pad = jnp.pad(x_nlc, ((0, 0), (0, S_pad - S_in), (0, 0)))      # zero tail

    # Per-tap phase-major weights: w_all[i, ci, p*C_out + co] = W[ci, co, p+pad-i*S]
    w = weight.astype(dtype)
    zeros_tap = jnp.zeros((C_in, C_out), dtype)
    taps = []
    for i in range(J):
        cols = []
        for p in range(S):
            k = p + pad - i * S
            cols.append(w[:, :, k] if 0 <= k < K else zeros_tap)
        taps.append(jnp.concatenate(cols, axis=1))                   # (C_in, N)
    w_all = jnp.stack(taps, axis=0)                                  # (J, C_in, N)
    if N_pad != N:
        w_all = jnp.pad(w_all, ((0, 0), (0, 0), (0, N_pad - N)))

    if bias is None:
        bias = jnp.zeros((C_out,), dtype)
    b_vec = jnp.tile(bias.astype(dtype), S)
    if N_pad != N:
        b_vec = jnp.pad(b_vec, (0, N_pad - N))
    b_vec = b_vec[None, :]                                           # (1, N_pad)

    kernel = functools.partial(_upsample_tconv_kernel, n_taps=J)

    flops = 2 * B * nT * M * J * C_in * N_pad
    bytes_acc = ((B * nT * (M + H) * C_in + J * C_in * N_pad + N_pad) * ebytes
                 + B * nT * M * N_pad * obytes)
    cost = pl.CostEstimate(flops=int(flops), transcendentals=0,
                           bytes_accessed=int(bytes_acc))

    out_pm = pl.pallas_call(
        kernel,
        out_shape=jax.ShapeDtypeStruct((B, nT * M, N_pad), out_dtype),
        grid_spec=pltpu.PrefetchScalarGridSpec(
            num_scalar_prefetch=0,
            grid=(B, nT),
            in_specs=[
                # main input tile
                pl.BlockSpec((1, M, C_in), lambda b, t: (b, t, 0)),
                # halo-only block: rows [(t+1)*M, (t+1)*M + H), always in-bounds
                # thanks to the host-side zero padding.
                pl.BlockSpec((1, H, C_in),
                             lambda b, t: (b, (t + 1) * m_per_h, 0)),
                # grid-invariant weight / bias
                pl.BlockSpec((J, C_in, N_pad), lambda b, t: (0, 0, 0)),
                pl.BlockSpec((1, N_pad), lambda b, t: (0, 0)),
            ],
            out_specs=pl.BlockSpec((1, M, N_pad), lambda b, t: (b, t, 0)),
        ),
        compiler_params=pltpu.CompilerParams(
            dimension_semantics=("parallel", "parallel"),
            vmem_limit_bytes=vmem_limit),
        cost_estimate=cost,
    )(x_pad, x_pad, w_all, b_vec)

    # Phase-major (B, rows, N_pad) -> (B, rows*S, C_out); drop lane padding and
    # the padded / cropped trailing time positions.
    y = out_pm if N_pad == N else out_pm[:, :, :N]
    y = y.reshape(B, nT * M * S, C_out)[:, :T, :]                    # (B, T, C_out)
    if channels_last:
        return y
    # TODO(synk): the torch NCL layout costs one fused transpose pass over the
    # high-rate output; pass channels_last=True if the consumer accepts (B,T,C).
    return jnp.transpose(y, (0, 2, 1))


if __name__ == "__main__":
    # Upsampling(n_chan=4, filter_sz=4, stride=2) -> ConvTranspose1d(4,4,4,2,padding=2)
    B, C, S_in = 2, 4, 16
    K, stride = 4, 2

    key = jax.random.PRNGKey(0)
    kx, kw, kb = jax.random.split(key, 3)
    x = jax.random.normal(kx, (B, C, S_in), dtype=jnp.float32)

    # kaiming_normal_(a=0.1, nonlinearity='leaky_relu') on the tconv weight
    # (torch ConvTranspose1d weight layout: (in_ch, out_ch, K); fan_in = out_ch*K).
    gain = (2.0 / (1.0 + 0.1 ** 2)) ** 0.5
    std = gain / ((C * K) ** 0.5)
    w = std * jax.random.normal(kw, (C, C, K), dtype=jnp.float32)
    # The module's init zeroes the bias; use a nonzero one here so the bias
    # path of the kernel is exercised by the numerical check.
    b = 0.1 * jax.random.normal(kb, (C,), dtype=jnp.float32)

    # max_time_block=8 -> M=8, 2 time tiles: exercises the halo block, the
    # zero-padded tail tile and the lane-padded (N_pad=128) output path.
    y = upsampling_forward(x, w, b, stride=stride, max_time_block=8)
    jax.block_until_ready(y)

    # Reference: ConvTranspose1d == lhs-dilated conv with the flipped kernel.
    pad = K - stride
    w_oih = jnp.transpose(w, (1, 0, 2))[:, :, ::-1]          # (out, in, K), flipped taps
    y_ref = jax.lax.conv_general_dilated(
        x, w_oih, window_strides=(1,),
        padding=[(K - 1 - pad, K - 1 - pad)],
        lhs_dilation=(stride,),
        dimension_numbers=("NCH", "OIH", "NCH")) + b[None, :, None]

    T = S_in * stride + stride - K
    assert y.shape == (B, C, T), y.shape
    assert y_ref.shape == (B, C, T), y_ref.shape
    assert jnp.allclose(y, y_ref, atol=1e-5, rtol=1e-5), \
        float(jnp.max(jnp.abs(y - y_ref)))

    # channels_last fast path (skips the output transpose) must agree too.
    y_nlc = upsampling_forward(x, w, b, stride=stride, max_time_block=8,
                               channels_last=True)
    jax.block_until_ready(y_nlc)
    assert jnp.allclose(jnp.transpose(y_nlc, (0, 2, 1)), y_ref, atol=1e-5, rtol=1e-5)

    print("KERNEL_OK")
</pallas_src>

<mosaic_0001>
module attributes {stable_mosaic.version = 11 : i64} {
  func.func @_upsample_tconv_kernel(%arg0: i32, %arg1: i32, %arg2: memref<1x8x4xf32, #tpu.memory_space<vmem>>, %arg3: memref<1x8x4xf32, #tpu.memory_space<vmem>>, %arg4: memref<2x4x128xf32, #tpu.memory_space<vmem>>, %arg5: memref<1x128xf32, #tpu.memory_space<vmem>>, %arg6: memref<1x8x128xf32, #tpu.memory_space<vmem>>) attributes {dimension_semantics = [#tpu.dimension_semantics<parallel>, #tpu.dimension_semantics<parallel>], iteration_bounds = array<i64: 2, 2>, scalar_prefetch = 0 : i64, scratch_operands = 0 : i64, tpu.core_type = #tpu.core_type<tc>, window_params = [{transform_indices = @transform_0, window_bounds = array<i64: 1, 8, 4>}, {transform_indices = @transform_1, window_bounds = array<i64: 1, 8, 4>}, {pipeline_mode = #tpu.pipeline_mode<synchronous>, transform_indices = @transform_2, window_bounds = array<i64: 2, 4, 128>}, {pipeline_mode = #tpu.pipeline_mode<synchronous>, transform_indices = @transform_3, window_bounds = array<i64: 1, 128>}, {transform_indices = @transform_4, window_bounds = array<i64: 1, 8, 128>}]} {
    %c0 = arith.constant 0 : index
    %c0_0 = arith.constant 0 : index
    %c0_1 = arith.constant 0 : index
    %0 = vector.load %arg2[%c0, %c0_0, %c0_1] : memref<1x8x4xf32, #tpu.memory_space<vmem>>, vector<1x8x4xf32>
    %1 = vector.shape_cast %0 : vector<1x8x4xf32> to vector<8x4xf32>
    %c0_2 = arith.constant 0 : index
    %c0_3 = arith.constant 0 : index
    %c0_4 = arith.constant 0 : index
    %2 = vector.load %arg4[%c0_2, %c0_3, %c0_4] : memref<2x4x128xf32, #tpu.memory_space<vmem>>, vector<1x4x128xf32>
    %3 = vector.shape_cast %2 : vector<1x4x128xf32> to vector<4x128xf32>
    %cst = arith.constant dense<0.000000e+00> : vector<8x128xf32>
    %4 = tpu.matmul %1, %3, %cst {dimension_numbers = #tpu.dot_dimension_numbers<[1], [0], [0], [1], [0, 0, 1, 1], [], []>} : vector<8x4xf32>, vector<4x128xf32>, vector<8x128xf32> -> vector<8x128xf32>
    %c0_5 = arith.constant 0 : index
    %c0_6 = arith.constant 0 : index
    %c0_7 = arith.constant 0 : index
    %5 = vector.load %arg3[%c0_5, %c0_6, %c0_7] : memref<1x8x4xf32, #tpu.memory_space<vmem>>, vector<1x8x4xf32>
    %6 = vector.shape_cast %5 : vector<1x8x4xf32> to vector<8x4xf32>
    %7 = tpu.concatenate %1, %6 in 0 : vector<8x4xf32>, vector<8x4xf32> -> vector<16x4xf32>
    %8 = vector.extract_strided_slice %7 {offsets = [1, 0], sizes = [8, 4], strides = [1, 1]} : vector<16x4xf32> to vector<8x4xf32>
    %c1 = arith.constant 1 : index
    %c0_8 = arith.constant 0 : index
    %c0_9 = arith.constant 0 : index
    %9 = vector.load %arg4[%c1, %c0_8, %c0_9] : memref<2x4x128xf32, #tpu.memory_space<vmem>>, vector<1x4x128xf32>
    %10 = vector.shape_cast %9 : vector<1x4x128xf32> to vector<4x128xf32>
    %cst_10 = arith.constant dense<0.000000e+00> : vector<8x128xf32>
    %11 = tpu.matmul %8, %10, %cst_10 {dimension_numbers = #tpu.dot_dimension_numbers<[1], [0], [0], [1], [0, 0, 1, 1], [], []>} : vector<8x4xf32>, vector<4x128xf32>, vector<8x128xf32> -> vector<8x128xf32>
    %12 = arith.addf %4, %11 : vector<8x128xf32>
    %c0_11 = arith.constant 0 : index
    %c0_12 = arith.constant 0 : index
    %13 = vector.load %arg5[%c0_11, %c0_12] : memref<1x128xf32, #tpu.memory_space<vmem>>, vector<1x128xf32>
    %14 = vector.broadcast %13 : vector<1x128xf32> to vector<8x128xf32>
    %15 = arith.addf %12, %14 : vector<8x128xf32>
    %16 = vector.shape_cast %15 : vector<8x128xf32> to vector<1x8x128xf32>
    %c0_13 = arith.constant 0 : index
    %c0_14 = arith.constant 0 : index
    %c0_15 = arith.constant 0 : index
    %17 = vector.load %arg6[%c0_13, %c0_14, %c0_15] : memref<1x8x128xf32, #tpu.memory_space<vmem>>, vector<1x8x128xf32>
    tpu.vector_store %arg6[%c0_13, %c0_14, %c0_15], %16 {strides = array<i32>} : memref<1x8x128xf32, #tpu.memory_space<vmem>>, vector<1x8x128xf32>,
    return
  }
  func.func @transform_0(%arg0: i32, %arg1: i32) -> (i32, i32, i32) {
    %c0_i32 = arith.constant 0 : i32
    %c0_i32_0 = arith.constant 0 : i32
    return %arg0, %arg1, %c0_i32 : i32, i32, i32
  }
  func.func @transform_1(%arg0: i32, %arg1: i32) -> (i32, i32, i32) {
    %c1_i32 = arith.constant 1 : i32
    %0 = arith.addi %arg1, %c1_i32 : i32
    %c1_i32_0 = arith.constant 1 : i32
    %1 = arith.muli %0, %c1_i32_0 : i32
    %c0_i32 = arith.constant 0 : i32
    %c0_i32_1 = arith.constant 0 : i32
    return %arg0, %1, %c0_i32 : i32, i32, i32
  }
  func.func @transform_2(%arg0: i32, %arg1: i32) -> (i32, i32, i32) {
    %c0_i32 = arith.constant 0 : i32
    %c0_i32_0 = arith.constant 0 : i32
    %c0_i32_1 = arith.constant 0 : i32
    %c0_i32_2 = arith.constant 0 : i32
    return %c0_i32, %c0_i32_0, %c0_i32_1 : i32, i32, i32
  }
  func.func @transform_3(%arg0: i32, %arg1: i32) -> (i32, i32) {
    %c0_i32 = arith.constant 0 : i32
    %c0_i32_0 = arith.constant 0 : i32
    %c0_i32_1 = arith.constant 0 : i32
    return %c0_i32, %c0_i32_0 : i32, i32
  }
  func.func @transform_4(%arg0: i32, %arg1: i32) -> (i32, i32, i32) {
    %c0_i32 = arith.constant 0 : i32
    %c0_i32_0 = arith.constant 0 : i32
    return %arg0, %arg1, %c0_i32 : i32, i32, i32
  }
}

</mosaic_0001>

<llo_original>
// kernel: tpu_custom_call.1
$region0: #{tpu_custom_call.1}
  #allocation0 [shape = 'u32[]', space=smem, size = 0x4, offset = 0x4, fixed_abs, tag = 'smem constant byte address 0x4 - core index']
  #allocation1 [shape = 'u32[144,128]{1,0:T(1,128)}', space=vmem, size = 0x12000, scoped, tag = 'internal scratch']
  %s0 = inlined_call_operand.vmem [shape: f32[2,24,4], index: 0, kind: input, shape index: {}]
  %s1 = inlined_call_operand.vmem [shape: f32[2,24,4], index: 1, kind: input, shape index: {}]
  %s2 = inlined_call_operand.vmem [shape: f32[2,4,128], index: 2, kind: input, shape index: {}]
  %s3 = inlined_call_operand.vmem [shape: f32[1,128], index: 3, kind: input, shape index: {}]
  %s4 = inlined_call_operand.hbm [shape: f32[2,16,128], index: 4, kind: output, shape index: {}]
  %s5 = sld [smem:[#allocation0]]
  $region49: #{tpu_custom_call.1} parent=0
    _
  %s7 = ssub.s32 1, %s5
  %s8 = scalar_select 0, %s7, %s5
  $region1: #{tpu_custom_call.1} parent=0
    #allocation2 [shape = 'u8[8192]{0}', space=vmem, size = 0x2000, scoped, tag = 'output window, operand 0']
    #allocation3 [shape = 's32[2]{0}', space=sflag, size = 0x8, scoped, tag = 'scoped memory for tpu_custom_call.1']
    %9 = vsyncpa [#allocation3], 0
    %s10 = scalar_lea.sflag [#allocation3], 1
    %11 = vsyncpa %s10, 0
    loop: start=0, step=1, limit=6
    $region2: #{tpu_custom_call.1} parent=1 // loop_pre_header
      _
    $region3: #{tpu_custom_call.1} parent=1 // loop_header
      %s13 = sphi 0, %s17
      %p14 = scmp.ge.s32.totalorder %s13, 6
      %s20 = sphi 0, %s32
      %s21 = sphi 0, %s28
      %s22 = sphi 0, %s20
      %s23 = sphi 0, %s21
      %s24 = sphi 0, %s22
      %s25 = sphi 0, %s23
      %s37 = sphi 0, %s39
      %s40 = sphi 0, %s37
      %s41 = sphi 0, %s40
      %s57 = sphi 0, %s41
      %s67 = sphi 0, %s69
      %s70 = sphi 0, %s67
      %s71 = sphi 0, %s70
      %s87 = sphi 0, %s71
      %s91 = sphi 0, %s91
      %s93 = sphi 0, %s91
      %s94 = sphi 0, %s93
      %s108 = sphi 0, %s94
      %s112 = sphi 0, %s112
      %s114 = sphi 0, %s112
      %s115 = sphi 0, %s114
      %s129 = sphi 0, %s115
      %s137 = sphi 0, %s139
      %s140 = sphi 0, %s137
      %s141 = sphi 0, %s140
      %s157 = sphi 0, %s141
    $region4: #{tpu_custom_call.1} parent=1 // loop_header_branch
      %16 = sbr.rel (%p14) target = $region8
    $region5: #{tpu_custom_call.1} parent=1 // loop_body
      %s18 = ssub.s32 %s13, 1
      %s19 = ssub.s32 %s13, 2
      %s26 = sadd.s32 1, %s21
      %p27 = scmp.ge.s32.totalorder %s26, 2
      %s28 = scalar_select %p27, 0, %s26
      %s29 = sadd.s32 1, %s20
      %s30 = scalar_select %p27, %s29, %s20
      %p31 = scmp.ge.s32.totalorder %s30, 2
      %s32 = scalar_select %p31, 0, %s30
      %s33 = ssub.s32 %s20, %s32
      %s34 = ssub.s32 %s21, %s28
      %s35 = sor.u32 %s33, %s34
      %p36 = scmp.eq.s32.totalorder %s35, 0
      %s38 = sadd.s32 %s37, 1
      %s39 = scalar_select %p36, %s37, %s38
      %p42 = pneg %p36
      %p43 = scmp.eq.s32.totalorder %s13, 3
      %p44 = por %p42, %p43
      %p45 = scmp.ne.s32.totalorder %s37, %s40
      %p46 = scmp.eq.s32.totalorder %s13, 0
      %p47 = por %p45, %p46
      %p48 = scmp.ne.s32.totalorder %s37, %s40
      %p49 = scmp.eq.s32.totalorder %s18, 3
      %p50 = por %p48, %p49
      %p51 = scmp.ne.s32.totalorder %s40, %s41
      %p52 = scmp.eq.s32.totalorder %s18, 0
      %p53 = por %p51, %p52
      %p54 = scmp.ne.s32.totalorder %s40, %s41
      %p55 = scmp.eq.s32.totalorder %s19, 3
      %p56 = por %p54, %p55
      %p58 = scmp.ne.s32.totalorder %s41, %s57
      %p59 = scmp.eq.s32.totalorder %s19, 0
      %p60 = por %p58, %p59
      %s61 = sadd.s32 %s21, 1
      %s62 = sadd.s32 %s28, 1
      %s63 = ssub.s32 %s20, %s32
      %s64 = ssub.s32 %s61, %s62
      %s65 = sor.u32 %s63, %s64
      %p66 = scmp.eq.s32.totalorder %s65, 0
      %s68 = sadd.s32 %s67, 1
      %s69 = scalar_select %p66, %s67, %s68
      %p72 = pneg %p66
      %p73 = scmp.eq.s32.totalorder %s13, 3
      %p74 = por %p72, %p73
      %p75 = scmp.ne.s32.totalorder %s67, %s70
      %p76 = scmp.eq.s32.totalorder %s13, 0
      %p77 = por %p75, %p76
      %p78 = scmp.ne.s32.totalorder %s67, %s70
      %p79 = scmp.eq.s32.totalorder %s18, 3
      %p80 = por %p78, %p79
      %p81 = scmp.ne.s32.totalorder %s70, %s71
      %p82 = scmp.eq.s32.totalorder %s18, 0
      %p83 = por %p81, %p82
      %p84 = scmp.ne.s32.totalorder %s70, %s71
      %p85 = scmp.eq.s32.totalorder %s19, 3
      %p86 = por %p84, %p85
      %p88 = scmp.ne.s32.totalorder %s71, %s87
      %p89 = scmp.eq.s32.totalorder %s19, 0
      %p90 = por %p88, %p89
      %s92 = sadd.s32 %s91, 1
      %p95 = scmp.eq.s32.totalorder %s13, 3
      %p96 = scmp.ne.s32.totalorder %s91, %s93
      %p97 = scmp.eq.s32.totalorder %s13, 0
      %p98 = por %p96, %p97
      %p99 = scmp.ne.s32.totalorder %s91, %s93
      %p100 = scmp.eq.s32.totalorder %s18, 3
      %p101 = por %p99, %p100
      %p102 = scmp.ne.s32.totalorder %s93, %s94
      %p103 = scmp.eq.s32.totalorder %s18, 0
      %p104 = por %p102, %p103
      %p105 = scmp.ne.s32.totalorder %s93, %s94
      %p106 = scmp.eq.s32.totalorder %s19, 3
      %p107 = por %p105, %p106
      %p109 = scmp.ne.s32.totalorder %s94, %s108
      %p110 = scmp.eq.s32.totalorder %s19, 0
      %p111 = por %p109, %p110
      %s113 = sadd.s32 %s112, 1
      %p116 = scmp.eq.s32.totalorder %s13, 3
      %p117 = scmp.ne.s32.totalorder %s112, %s114
      %p118 = scmp.eq.s32.totalorder %s13, 0
      %p119 = por %p117, %p118
      %p120 = scmp.ne.s32.totalorder %s112, %s114
      %p121 = scmp.eq.s32.totalorder %s18, 3
      %p122 = por %p120, %p121
      %p123 = scmp.ne.s32.totalorder %s114, %s115
      %p124 = scmp.eq.s32.totalorder %s18, 0
      %p125 = por %p123, %p124
      %p126 = scmp.ne.s32.totalorder %s114, %s115
      %p127 = scmp.eq.s32.totalorder %s19, 3
      %p128 = por %p126, %p127
      %p130 = scmp.ne.s32.totalorder %s115, %s129
      %p131 = scmp.eq.s32.totalorder %s19, 0
      %p132 = por %p130, %p131
      %s133 = ssub.s32 %s20, %s32
      %s134 = ssub.s32 %s21, %s28
      %s135 = sor.u32 %s133, %s134
      %p136 = scmp.eq.s32.totalorder %s135, 0
      %s138 = sadd.s32 %s137, 1
      %s139 = scalar_select %p136, %s137, %s138
      %p142 = pneg %p136
      %p143 = scmp.eq.s32.totalorder %s13, 3
      %p144 = por %p142, %p143
      %p145 = scmp.ne.s32.totalorder %s137, %s140
      %p146 = scmp.eq.s32.totalorder %s13, 0
      %p147 = por %p145, %p146
      %p148 = scmp.ne.s32.totalorder %s137, %s140
      %p149 = scmp.eq.s32.totalorder %s18, 3
      %p150 = por %p148, %p149
      %p151 = scmp.ne.s32.totalorder %s140, %s141
      %p152 = scmp.eq.s32.totalorder %s18, 0
      %p153 = por %p151, %p152
      %p154 = scmp.ne.s32.totalorder %s140, %s141
      %p155 = scmp.eq.s32.totalorder %s19, 3
      %p156 = por %p154, %p155
      %p158 = scmp.ne.s32.totalorder %s141, %s157
      %p159 = scmp.eq.s32.totalorder %s19, 0
      %p160 = por %p158, %p159
      %p161 = scmp.le.s32.totalorder 1, %s13
      %p162 = scmp.lt.s32.totalorder %s13, 5
      %p163 = pnand %p161, %p162
      %p164 = pneg %p163
      // Predicated region
      $region9: #{tpu_custom_call.1} parent=5 // pred_check
        _
      $region10: #{tpu_custom_call.1} parent=5 // pred_check_branch
        %166 = sbr.rel (%p163) target = $region12
      $region11: #{tpu_custom_call.1} parent=5 // pred_region
        %s167 = ssub.s32 %s13, 1
        // Predicated region
        $region13: #{tpu_custom_call.1} parent=11 // pred_check
          %p168 = pneg %p104
        $region14: #{tpu_custom_call.1} parent=11 // pred_check_branch
          %170 = sbr.rel (%p168) target = $region16
        $region15: #{tpu_custom_call.1} parent=11 // pred_region
          _
        $region16: #{tpu_custom_call.1} parent=11 // pred_fallthru
          _
        // Predicated region
        $region17: #{tpu_custom_call.1} parent=11 // pred_check
          %p171 = pneg %p125
        $region18: #{tpu_custom_call.1} parent=11 // pred_check_branch
          %173 = sbr.rel (%p171) target = $region20
        $region19: #{tpu_custom_call.1} parent=11 // pred_region
          _
        $region20: #{tpu_custom_call.1} parent=11 // pred_fallthru
          _
      $region12: #{tpu_custom_call.1} parent=5 // pred_fallthru
        _
      %p174 = scmp.lt.s32.totalorder %s13, 4
      // Predicated region
      $region21: #{tpu_custom_call.1} parent=5 // pred_check
        %p175 = pneg %p174
      $region22: #{tpu_custom_call.1} parent=5 // pred_check_branch
        %177 = sbr.rel (%p175) target = $region24
      $region23: #{tpu_custom_call.1} parent=5 // pred_region
        // Predicated region
        $region25: #{tpu_custom_call.1} parent=23 // pred_check
          %p178 = pneg %p47
        $region26: #{tpu_custom_call.1} parent=23 // pred_check_branch
          %180 = sbr.rel (%p178) target = $region28
        $region27: #{tpu_custom_call.1} parent=23 // pred_region
          %p181 = scmp.lt.s32.totalorder %s20, 1
          %s182 = scalar_select %p181, %s20, 1
          %p183 = scmp.lt.s32.totalorder %s21, 2
          %s184 = scalar_select %p183, %s21, 2
          %s185 = smul.addr %s182, 3
          %s186 = sadd.s32 %s184, %s185
          %s187 = smul.addr %s186, 8
          %s188 = scalar_lea.vmem %s0, %s187
        $region28: #{tpu_custom_call.1} parent=23 // pred_fallthru
          _
        // Predicated region
        $region29: #{tpu_custom_call.1} parent=23 // pred_check
          %p189 = pneg %p77
        $region30: #{tpu_custom_call.1} parent=23 // pred_check_branch
          %191 = sbr.rel (%p189) target = $region32
        $region31: #{tpu_custom_call.1} parent=23 // pred_region
          %s192 = sadd.s32 %s21, 1
          %p193 = scmp.lt.s32.totalorder %s20, 1
          %s194 = scalar_select %p193, %s20, 1
          %p195 = scmp.lt.s32.totalorder %s192, 2
          %s196 = scalar_select %p195, %s192, 2
          %s197 = smul.addr %s194, 3
          %s198 = sadd.s32 %s196, %s197
          %s199 = smul.addr %s198, 8
          %s200 = scalar_lea.vmem %s1, %s199
          %s201 = sadd.s32 %s21, 1
        $region32: #{tpu_custom_call.1} parent=23 // pred_fallthru
          _
      $region24: #{tpu_custom_call.1} parent=5 // pred_fallthru
        _
      %p202 = scmp.le.s32.totalorder 1, %s13
      %p203 = scmp.lt.s32.totalorder %s13, 5
      %p204 = pnand %p202, %p203
      %p205 = pneg %p204
      // Predicated region
      $region33: #{tpu_custom_call.1} parent=5 // pred_check
        _
      $region34: #{tpu_custom_call.1} parent=5 // pred_check_branch
        %207 = sbr.rel (%p204) target = $region36
      $region35: #{tpu_custom_call.1} parent=5 // pred_region
        %s208 = ssub.s32 %s13, 1
        %p209 = scmp.lt.s32.totalorder %s22, 1
        %s210 = scalar_select %p209, %s22, 1
        %p211 = scmp.lt.s32.totalorder %s23, 2
        %s212 = scalar_select %p211, %s23, 2
        %s213 = smul.addr %s210, 3
        %s214 = sadd.s32 %s212, %s213
        %s215 = smul.addr %s214, 8
        %s216 = scalar_lea.vmem %s0, %s215
        %p217 = pneg %p53
        %p218 = pneg %p50
        %s219 = sadd.s32 %s23, 1
        %p220 = scmp.lt.s32.totalorder %s22, 1
        %s221 = scalar_select %p220, %s22, 1
        %p222 = scmp.lt.s32.totalorder %s219, 2
        %s223 = scalar_select %p222, %s219, 2
        %s224 = smul.addr %s221, 3
        %s225 = sadd.s32 %s223, %s224
        %s226 = smul.addr %s225, 8
        %s227 = scalar_lea.vmem %s1, %s226
        %p228 = pneg %p83
        %p229 = pneg %p80
        %p230 = pneg %p104
        %p231 = pneg %p101
        %p232 = pneg %p125
        %p233 = pneg %p122
        %p234 = pneg %p153
        %p235 = pneg %p150
        %s236 = sand.u32 %s140, 1
        %s237 = scalar_lea.sflag [#allocation3], %s236
        %s238 = sand.u32 %s140, 1
        %s239 = smul.addr %s238, 8
        %s240 = scalar_lea.vmem [#allocation2], %s239
        %p241 = scmp.lt.s32.totalorder %s22, 1
        %s242 = scalar_select %p241, %s22, 1
        %p243 = scmp.lt.s32.totalorder %s23, 2
        %s244 = scalar_select %p243, %s23, 2
        %s245 = smul.addr %s242, 3
        %s246 = sadd.s32 %s244, %s245
        %s247 = smul.addr %s246, 8
        %s248 = scalar_lea.vmem %s0, %s247
        %s249 = sadd.s32 %s23, 1
        %p250 = scmp.lt.s32.totalorder %s22, 1
        %s251 = scalar_select %p250, %s22, 1
        %p252 = scmp.lt.s32.totalorder %s249, 2
        %s253 = scalar_select %p252, %s249, 2
        %s254 = smul.addr %s251, 3
        %s255 = sadd.s32 %s253, %s254
        %s256 = smul.addr %s255, 8
        %s257 = scalar_lea.vmem %s1, %s256
        %s258 = sadd.s32 %s23, 1
        %v259 = vld [vmem:[%s248] sm:$0xff]
        %v260 = vld [vmem:[%s2] sm:$0xf]
        %v261 = vld [vmem:[%s257] sm:$0xff]
        %s262 = scalar_lea.vmem %s2, 4
        %v263 = vld [vmem:[%s262] sm:$0xf]
        %vm266 = vcmask 1046528
        %v267 = vrot.slane %v259, 1
        %v268 = vrot.slane %v261, 1
        %v269 = vsel %vm266, %v267, %v268
        %vm270 = vcmask 31744
        %v271 = vsel %vm270, %v269, 0
        %vm273 = vcmask 1043456
        %v275 = vsel %vm273, %v263, 0
        %277 = vmatprep.subr.mxu0 0.0
        %278 = vmatpush1.msra.mxu0 %v275
        %279 = vmatprep.subr.mxu0 0.0
        %280 = vmatpush1.msra.mxu0 0.0
        %281 = vmatprep.subr.mxu0 0.0
        %282 = vmatpush1.msra.mxu0 0.0
        %283 = vmatprep.subr.mxu0 0.0
        %284 = vmatpush1.msra.mxu0 0.0
        %285 = vmatprep.subr.mxu0 0.0
        %286 = vmatpush1.msra.mxu0 0.0
        %287 = vmatprep.subr.mxu0 0.0
        %288 = vmatpush1.msra.mxu0 0.0
        %289 = vmatprep.subr.mxu0 0.0
        %290 = vmatpush1.msra.mxu0 0.0
        %291 = vmatprep.subr.mxu0 0.0
        %292 = vmatpush1.msra.mxu0 0.0
        %293 = vmatprep.subr.mxu0 0.0
        %294 = vmatpush1.msra.mxu0 0.0
        %295 = vmatprep.subr.mxu0 0.0
        %296 = vmatpush1.msra.mxu0 0.0
        %297 = vmatprep.subr.mxu0 0.0
        %298 = vmatpush1.msra.mxu0 0.0
        %299 = vmatprep.subr.mxu0 0.0
        %300 = vmatpush1.msra.mxu0 0.0
        %301 = vmatprep.subr.mxu0 0.0
        %302 = vmatpush1.msra.mxu0 0.0
        %303 = vmatprep.subr.mxu0 0.0
        %304 = vmatpush1.msra.mxu0 0.0
        %305 = vmatprep.subr.mxu0 0.0
        %306 = vmatpush1.msra.mxu0 0.0
        %307 = vmatprep.subr.mxu0 0.0
        %308 = vmatpush1.msra.mxu0 0.0
        %309 = vmatprep.subr.mxu0 0.0
        %310 = vmatpush1.msra.mxu0 0.0
        %311 = vmatprep.subr.mxu0 0.0
        %312 = vmatpush1.msra.mxu0 0.0
        %313 = vmatprep.subr.mxu0 0.0
        %314 = vmatpush1.msra.mxu0 0.0
        %315 = vmatprep.subr.mxu0 0.0
        %316 = vmatpush1.msra.mxu0 0.0
        %317 = vmatprep.subr.mxu0 0.0
        %318 = vmatpush1.msra.mxu0 0.0
        %319 = vmatprep.subr.mxu0 0.0
        %320 = vmatpush1.msra.mxu0 0.0
        %321 = vmatprep.subr.mxu0 0.0
        %322 = vmatpush1.msra.mxu0 0.0
        %323 = vmatprep.subr.mxu0 0.0
        %324 = vmatpush1.msra.mxu0 0.0
        %325 = vmatprep.subr.mxu0 0.0
        %326 = vmatpush1.msra.mxu0 0.0
        %327 = vmatprep.subr.mxu0 0.0
        %328 = vmatpush1.msra.mxu0 0.0
        %329 = vmatprep.subr.mxu0 0.0
        %330 = vmatpush1.msra.mxu0 0.0
        %331 = vmatprep.subr.mxu0 0.0
        %332 = vmatpush1.msra.mxu0 0.0
        %333 = vmatprep.subr.mxu0 0.0
        %334 = vmatpush1.msra.mxu0 0.0
        %335 = vmatprep.subr.mxu0 0.0
        %336 = vmatpush1.msra.mxu0 0.0
        %337 = vmatprep.subr.mxu0 0.0
        %338 = vmatpush1.msra.mxu0 0.0
        %339 = vmatprep.subr.mxu0 0.0
        %340 = vmatpush1.msra.mxu0 0.0
        %341 = vmatprep.mubr.f32.mxu0 0.0
        %342 = vmatmul.mubr.f32.gmra.mrb[0].mxu0 %v271
        %v343 = vpop.f32.mrb[0].mxu0
        %v344 = vadd.f32 0.0, %v343
        %v345 = vpop.f32.mrb[0].mxu0
        %346 = vdwg.mxu0
        %v347 = vsel %vm270, %v259, 0
        %v350 = vsel %vm273, %v260, 0
        %352 = vmatprep.subr.mxu0 0.0
        %353 = vmatpush1.msra.mxu0 %v350
        %354 = vmatprep.subr.mxu0 0.0
        %355 = vmatpush1.msra.mxu0 0.0
        %356 = vmatprep.subr.mxu0 0.0
        %357 = vmatpush1.msra.mxu0 0.0
        %358 = vmatprep.subr.mxu0 0.0
        %359 = vmatpush1.msra.mxu0 0.0
        %360 = vmatprep.subr.mxu0 0.0
        %361 = vmatpush1.msra.mxu0 0.0
        %362 = vmatprep.subr.mxu0 0.0
        %363 = vmatpush1.msra.mxu0 0.0
        %364 = vmatprep.subr.mxu0 0.0
        %365 = vmatpush1.msra.mxu0 0.0
        %366 = vmatprep.subr.mxu0 0.0
        %367 = vmatpush1.msra.mxu0 0.0
        %368 = vmatprep.subr.mxu0 0.0
        %369 = vmatpush1.msra.mxu0 0.0
        %370 = vmatprep.subr.mxu0 0.0
        %371 = vmatpush1.msra.mxu0 0.0
        %372 = vmatprep.subr.mxu0 0.0
        %373 = vmatpush1.msra.mxu0 0.0
        %374 = vmatprep.subr.mxu0 0.0
        %375 = vmatpush1.msra.mxu0 0.0
        %376 = vmatprep.subr.mxu0 0.0
        %377 = vmatpush1.msra.mxu0 0.0
        %378 = vmatprep.subr.mxu0 0.0
        %379 = vmatpush1.msra.mxu0 0.0
        %380 = vmatprep.subr.mxu0 0.0
        %381 = vmatpush1.msra.mxu0 0.0
        %382 = vmatprep.subr.mxu0 0.0
        %383 = vmatpush1.msra.mxu0 0.0
        %384 = vmatprep.subr.mxu0 0.0
        %385 = vmatpush1.msra.mxu0 0.0
        %386 = vmatprep.subr.mxu0 0.0
        %387 = vmatpush1.msra.mxu0 0.0
        %388 = vmatprep.subr.mxu0 0.0
        %389 = vmatpush1.msra.mxu0 0.0
        %390 = vmatprep.subr.mxu0 0.0
        %391 = vmatpush1.msra.mxu0 0.0
        %392 = vmatprep.subr.mxu0 0.0
        %393 = vmatpush1.msra.mxu0 0.0
        %394 = vmatprep.subr.mxu0 0.0
        %395 = vmatpush1.msra.mxu0 0.0
        %396 = vmatprep.subr.mxu0 0.0
        %397 = vmatpush1.msra.mxu0 0.0
        %398 = vmatprep.subr.mxu0 0.0
        %399 = vmatpush1.msra.mxu0 0.0
        %400 = vmatprep.subr.mxu0 0.0
        %401 = vmatpush1.msra.mxu0 0.0
        %402 = vmatprep.subr.mxu0 0.0
        %403 = vmatpush1.msra.mxu0 0.0
        %404 = vmatprep.subr.mxu0 0.0
        %405 = vmatpush1.msra.mxu0 0.0
        %406 = vmatprep.subr.mxu0 0.0
        %407 = vmatpush1.msra.mxu0 0.0
        %408 = vmatprep.subr.mxu0 0.0
        %409 = vmatpush1.msra.mxu0 0.0
        %410 = vmatprep.subr.mxu0 0.0
        %411 = vmatpush1.msra.mxu0 0.0
        %412 = vmatprep.subr.mxu0 0.0
        %413 = vmatpush1.msra.mxu0 0.0
        %414 = vmatprep.subr.mxu0 0.0
        %415 = vmatpush1.msra.mxu0 0.0
        %416 = vmatprep.mubr.f32.mxu0 0.0
        %417 = vmatmul.mubr.f32.gmra.mrb[0].mxu0 %v347
        %v418 = vpop.f32.mrb[0].mxu0
        %v419 = vadd.f32 %v344, %v418
        %v420 = vpop.f32.mrb[0].mxu0
        %421 = vdwg.mxu0
        %v422 = vld [vmem:[%s3] sm:$0x1]
        %v424 = vlaneseq
        %v425 = vshrl.u32 %v424, 7
        %v426 = vsub.s32 0, %v425
        %v427 = vrot.slane %v422, %v426
        %v429 = vadd.f32 %v419, %v427
        %430 = vst [vmem:[%s240] sm:$0xff] %v429
        %s431 = sand.u32 %s140, 1
        %s432 = scalar_lea.sflag [#allocation3], %s431
        %s433 = sand.u32 %s140, 1
        %s434 = smul.addr %s433, 8
        %s435 = scalar_lea.vmem [#allocation2], %s434
        // Predicated region
        $region37: #{tpu_custom_call.1} parent=35 // pred_check
          %p436 = pneg %p150
        $region38: #{tpu_custom_call.1} parent=35 // pred_check_branch
          %438 = sbr.rel (%p436) target = $region40
        $region39: #{tpu_custom_call.1} parent=35 // pred_region
          %s440 = ssub.s32 128, 128
          %441 = vsyncadd %s432, %s440
          %s442 = smul.addr %s22, 2
          %s443 = sadd.s32 %s23, %s442
          %s444 = smul.addr %s443, 128
          %s445 = scalar_lea.hbm %s4, %s444
          %s447 = sshll.u32 %s435, 4
          %s448 = int_to_ptr.vmem [resolvable:$true] %s447
          %450 = dma.vmem_to_hbm [thread:$0]  %s448, 128, %s445, %s432
        $region40: #{tpu_custom_call.1} parent=35 // pred_fallthru
          _
      $region36: #{tpu_custom_call.1} parent=5 // pred_fallthru
        _
      %p451 = scmp.le.s32.totalorder 2, %s13
      // Predicated region
      $region41: #{tpu_custom_call.1} parent=5 // pred_check
        %p452 = pneg %p451
      $region42: #{tpu_custom_call.1} parent=5 // pred_check_branch
        %454 = sbr.rel (%p452) target = $region44
      $region43: #{tpu_custom_call.1} parent=5 // pred_region
        %s455 = ssub.s32 %s13, 2
        // Predicated region
        $region45: #{tpu_custom_call.1} parent=43 // pred_check
          %p456 = pneg %p156
        $region46: #{tpu_custom_call.1} parent=43 // pred_check_branch
          %458 = sbr.rel (%p456) target = $region48
        $region47: #{tpu_custom_call.1} parent=43 // pred_region
          %s459 = sand.u32 %s141, 1
          %s460 = scalar_lea.sflag [#allocation3], %s459
          %s461 = sand.u32 %s141, 1
          %s462 = smul.addr %s461, 8
          %s463 = scalar_lea.vmem [#allocation2], %s462
          %464 = dma.done %s460, 128
        $region48: #{tpu_custom_call.1} parent=43 // pred_fallthru
          _
      $region44: #{tpu_custom_call.1} parent=5 // pred_fallthru
        _
    $region6: #{tpu_custom_call.1} parent=1 // loop_footer
      %s17 = sadd.s32 1, %s13
    $region7: #{tpu_custom_call.1} parent=1 // loop_footer_branch
      %12 = sbr.rel target = $region3
    $region8: #{tpu_custom_call.1} parent=1 // loop_exit
      _
    %465 = vsyncpa [#allocation3], 1
    %s466 = scalar_lea.sflag [#allocation3], 1
    %467 = vsyncpa %s466, 1

</llo_original>
